<compile_context>
chip_gen: v5e
topology: v5e:2x2
jax: 0.10.0
libtpu: 0.0.40
codegen_flags: <defaults>
</compile_context>

<pallas_src>
import functools

import jax
import jax.numpy as jnp
from jax.experimental import pallas as pl
from jax.experimental.pallas import tpu as pltpu


def _round_up(x, m):
    return ((x + m - 1) // m) * m


def squeeze_block_kernel(x_ref, w1_ref, b1_ref, w2_ref, b2_ref, o_ref,
                         *, C, CS, HW_pad, inv_hw):
    """x_ref/o_ref: (nb, C*HW_pad) f32 VMEM blocks; params live in SMEM."""
    # Global average pool per channel: lane-reduce each static channel slice.
    pooled = []
    for c in range(C):
        xc = x_ref[:, c * HW_pad:(c + 1) * HW_pad]                  # (nb, HW_pad)
        pooled.append(jnp.sum(xc, axis=-1, keepdims=True) * inv_hw)  # (nb, 1)

    # FC1 (+ folded eval-mode BatchNorm1d) + ReLU as explicit VPU FMAs.
    hidden = []
    for j in range(CS):
        acc = pooled[0] * w1_ref[0, j]
        for c in range(1, C):
            acc = acc + pooled[c] * w1_ref[c, j]
        hidden.append(jnp.maximum(acc + b1_ref[j], 0.0))             # (nb, 1)

    # FC2 + sigmoid; out = att*x + x == x * (att + 1).  Lane-dense stores.
    for c in range(C):
        acc = hidden[0] * w2_ref[0, c]
        for j in range(1, CS):
            acc = acc + hidden[j] * w2_ref[j, c]
        scale = jax.nn.sigmoid(acc + b2_ref[c]) + 1.0                # (nb, 1)
        xc = x_ref[:, c * HW_pad:(c + 1) * HW_pad]
        o_ref[:, c * HW_pad:(c + 1) * HW_pad] = xc * scale


def _choose_batch_block(N, row_bytes, vmem_budget_bytes,
                        target_buffer_bytes=4 * 1024 * 1024):
    """Batch-block so the 4 streaming buffers (in+out, double-buffered) are a
    few MiB each and fit the VMEM budget; keep >=2 grid steps when N allows so
    megacore can shard the batch."""
    headroom = 2 * 1024 * 1024
    by_vmem = max(1, (vmem_budget_bytes - headroom) // (4 * row_bytes))
    by_target = max(1, target_buffer_bytes // row_bytes)
    nb = int(min(N, by_vmem, by_target))
    if nb >= N:
        if N >= 16:
            half = -(-N // 2)
            return int(min(N, _round_up(half, 8)))
        return int(N)
    return int(max(8, (nb // 8) * 8))


def squeeze_block(x_nchw, params, *, batch_block=None, eps=1e-5):
    """x_nchw: (N, C, H, W) float32; params: dict (see init_params)."""
    N, C, H, W = x_nchw.shape
    HW = H * W
    CS = params["w1"].shape[1]

    # Fold eval-mode BatchNorm1d into FC1: h = pooled @ w1' + b1'.
    s = params["gamma"] * jax.lax.rsqrt(params["running_var"] + eps)      # (1, CS)
    w1_eff = params["w1"] * s                                             # (C, CS)
    b1_eff = ((params["b1"] - params["running_mean"]) * s
              + params["beta"]).reshape(CS)                               # (CS,)
    w2 = params["w2"]                                                     # (CS, C)
    b2 = params["b2"].reshape(C)                                          # (C,)

    # Lane-dense layout: pad HW up to a multiple of 128, fold channels into lanes.
    HW_pad = _round_up(HW, 128)
    row = C * HW_pad
    x3 = x_nchw.reshape(N, C, HW)
    if HW_pad != HW:
        x3 = jnp.pad(x3, ((0, 0), (0, 0), (0, HW_pad - HW)))
    x2 = x3.reshape(N, row)

    # Per-generation VMEM budget (v7x: 64 MiB physical; v5e/v6e: 128 MiB).
    try:
        info = pltpu.get_tpu_info()
        vmem_cap = int(getattr(info, "vmem_capacity_bytes", 64 * 1024 * 1024))
    except Exception:
        vmem_cap = 64 * 1024 * 1024
    vmem_budget = int(min((3 * vmem_cap) // 4, 96 * 1024 * 1024))

    row_bytes = row * 4
    nb = batch_block if batch_block is not None else _choose_batch_block(
        N, row_bytes, vmem_budget)

    # Pad batch so nb divides it (padded rows are zero; harmless, sliced off).
    N_pad = _round_up(N, nb)
    if N_pad != N:
        x2 = jnp.pad(x2, ((0, N_pad - N), (0, 0)))
    grid = (N_pad // nb,)

    cost = pl.CostEstimate(
        flops=N_pad * (2 * C * HW_pad + 4 * C * CS + 2 * (C + CS)),
        transcendentals=N_pad * C,
        bytes_accessed=4 * (2 * N_pad * row + 2 * C * CS + C + CS),
    )

    kernel = functools.partial(squeeze_block_kernel, C=C, CS=CS,
                               HW_pad=HW_pad, inv_hw=1.0 / HW)

    out = pl.pallas_call(
        kernel,
        out_shape=jax.ShapeDtypeStruct((N_pad, row), x2.dtype),
        grid_spec=pltpu.PrefetchScalarGridSpec(
            num_scalar_prefetch=0,
            grid=grid,
            in_specs=[
                # Streaming input: one lane-dense (nb, C*HW_pad) block per step.
                pl.BlockSpec((nb, row), lambda n: (n, 0)),
                # Tiny parameters: whole arrays resident in SMEM (scalar reads).
                pl.BlockSpec(memory_space=pltpu.MemorySpace.SMEM),
                pl.BlockSpec(memory_space=pltpu.MemorySpace.SMEM),
                pl.BlockSpec(memory_space=pltpu.MemorySpace.SMEM),
                pl.BlockSpec(memory_space=pltpu.MemorySpace.SMEM),
            ],
            out_specs=pl.BlockSpec((nb, row), lambda n: (n, 0)),
        ),
        compiler_params=pltpu.CompilerParams(
            dimension_semantics=("parallel",),    # megacore-shard the batch
            vmem_limit_bytes=vmem_budget,
        ),
        cost_estimate=cost,
    )(x2, w1_eff, b1_eff, w2, b2)

    out = out[:N].reshape(N, C, HW_pad)[:, :, :HW].reshape(N, C, H, W)
    return out


def init_params(key, in_channels, squeeze_rate):
    """Deterministic synthetic parameters (shapes from SqueezeBlock.__init__)."""
    cs = in_channels // squeeze_rate
    k = jax.random.split(key, 6)
    # Linear weights stored pre-transposed (row-major y = x @ W).
    w1 = jax.random.normal(k[0], (in_channels, cs), jnp.float32) * 0.1   # FC1.weight.T
    b1 = jax.random.normal(k[1], (1, cs), jnp.float32) * 0.1             # FC1.bias
    w2 = jax.random.normal(k[2], (cs, in_channels), jnp.float32) * 0.1   # FC2.weight.T
    b2 = jax.random.normal(k[3], (1, in_channels), jnp.float32) * 0.1    # FC2.bias
    gamma = 1.0 + 0.1 * jax.random.normal(k[4], (1, cs), jnp.float32)    # bn1.weight
    beta = 0.1 * jax.random.normal(k[5], (1, cs), jnp.float32)           # bn1.bias
    running_mean = jnp.zeros((1, cs), jnp.float32)
    running_var = jnp.ones((1, cs), jnp.float32)
    return dict(w1=w1, b1=b1, w2=w2, b2=b2, gamma=gamma, beta=beta,
                running_mean=running_mean, running_var=running_var)


def squeeze_block_ref(x_nchw, p, eps=1e-5):
    """Plain-JAX reference (eval-mode BN, un-folded params)."""
    pooled = jnp.mean(x_nchw, axis=(2, 3))                         # (N, C)
    h = pooled @ p["w1"] + p["b1"]
    h = (h - p["running_mean"]) / jnp.sqrt(p["running_var"] + eps)
    h = h * p["gamma"] + p["beta"]
    h = jnp.maximum(h, 0.0)
    att = jax.nn.sigmoid(h @ p["w2"] + p["b2"])                    # (N, C)
    return att[:, :, None, None] * x_nchw + x_nchw


if __name__ == "__main__":
    key = jax.random.PRNGKey(0)
    kx, kp, kx2, kx3 = jax.random.split(key, 4)

    # Primary case: SqueezeBlock(in_channels=4, squeeze_rate=2, feature_map_size=16)
    N, C, H, W = 2, 4, 16, 16
    x = jax.random.normal(kx, (N, C, H, W), jnp.float32)
    params = init_params(kp, in_channels=C, squeeze_rate=2)
    out = jax.block_until_ready(squeeze_block(x, params))
    ref = squeeze_block_ref(x, params)
    assert out.shape == (N, C, H, W)
    assert jnp.allclose(out, ref, atol=1e-5, rtol=1e-5), "mismatch vs reference (N=2)"

    # Multi-block grid path (exercises >=2 grid steps / megacore sharding).
    xb = jax.random.normal(kx2, (32, C, H, W), jnp.float32)
    outb = jax.block_until_ready(squeeze_block(xb, params))
    assert jnp.allclose(outb, squeeze_block_ref(xb, params),
                        atol=1e-5, rtol=1e-5), "mismatch vs reference (N=32)"

    # Non-128-multiple feature map (exercises HW lane padding path).
    xs = jax.random.normal(kx3, (2, C, 7, 7), jnp.float32)
    outs = jax.block_until_ready(squeeze_block(xs, params))
    assert jnp.allclose(outs, squeeze_block_ref(xs, params),
                        atol=1e-5, rtol=1e-5), "mismatch vs reference (7x7)"

    print("KERNEL_OK")
</pallas_src>

<mosaic_0001>
module attributes {stable_mosaic.version = 11 : i64} {
  func.func @squeeze_block_kernel(%arg0: i32, %arg1: memref<2x1024xf32, #tpu.memory_space<vmem>>, %arg2: memref<4x2xf32, #tpu.memory_space<smem>>, %arg3: memref<2xf32, #tpu.memory_space<smem>>, %arg4: memref<2x4xf32, #tpu.memory_space<smem>>, %arg5: memref<4xf32, #tpu.memory_space<smem>>, %arg6: memref<2x1024xf32, #tpu.memory_space<vmem>>) attributes {dimension_semantics = [#tpu.dimension_semantics<parallel>], iteration_bounds = array<i64: 1>, scalar_prefetch = 0 : i64, scratch_operands = 0 : i64, tpu.core_type = #tpu.core_type<tc>, window_params = [{transform_indices = @transform_0, window_bounds = array<i64: 2, 1024>}, {transform_indices = @transform_1, window_bounds = array<i64: 4, 2>}, {transform_indices = @transform_2, window_bounds = array<i64: 2>}, {transform_indices = @transform_3, window_bounds = array<i64: 2, 4>}, {transform_indices = @transform_4, window_bounds = array<i64: 4>}, {transform_indices = @transform_5, window_bounds = array<i64: 2, 1024>}]} {
    %c0 = arith.constant 0 : index
    %c0_0 = arith.constant 0 : index
    %0 = vector.load %arg1[%c0, %c0_0] : memref<2x1024xf32, #tpu.memory_space<vmem>>, vector<2x256xf32>
    %cst = arith.constant dense<0.000000e+00> : vector<2xf32>
    %1 = vector.multi_reduction <add>, %0, %cst [1] : vector<2x256xf32> to vector<2xf32>
    %2 = vector.shape_cast %1 : vector<2xf32> to vector<2x1xf32>
    %cst_1 = arith.constant 3.906250e-03 : f32
    %3 = vector.broadcast %cst_1 : f32 to vector<2x1xf32>
    %4 = arith.mulf %2, %3 : vector<2x1xf32>
    %c0_2 = arith.constant 0 : index
    %c256 = arith.constant 256 : index
    %5 = vector.load %arg1[%c0_2, %c256] : memref<2x1024xf32, #tpu.memory_space<vmem>>, vector<2x256xf32>
    %cst_3 = arith.constant dense<0.000000e+00> : vector<2xf32>
    %6 = vector.multi_reduction <add>, %5, %cst_3 [1] : vector<2x256xf32> to vector<2xf32>
    %7 = vector.shape_cast %6 : vector<2xf32> to vector<2x1xf32>
    %cst_4 = arith.constant 3.906250e-03 : f32
    %8 = vector.broadcast %cst_4 : f32 to vector<2x1xf32>
    %9 = arith.mulf %7, %8 : vector<2x1xf32>
    %c0_5 = arith.constant 0 : index
    %c512 = arith.constant 512 : index
    %10 = vector.load %arg1[%c0_5, %c512] : memref<2x1024xf32, #tpu.memory_space<vmem>>, vector<2x256xf32>
    %cst_6 = arith.constant dense<0.000000e+00> : vector<2xf32>
    %11 = vector.multi_reduction <add>, %10, %cst_6 [1] : vector<2x256xf32> to vector<2xf32>
    %12 = vector.shape_cast %11 : vector<2xf32> to vector<2x1xf32>
    %cst_7 = arith.constant 3.906250e-03 : f32
    %13 = vector.broadcast %cst_7 : f32 to vector<2x1xf32>
    %14 = arith.mulf %12, %13 : vector<2x1xf32>
    %c0_8 = arith.constant 0 : index
    %c768 = arith.constant 768 : index
    %15 = vector.load %arg1[%c0_8, %c768] : memref<2x1024xf32, #tpu.memory_space<vmem>>, vector<2x256xf32>
    %cst_9 = arith.constant dense<0.000000e+00> : vector<2xf32>
    %16 = vector.multi_reduction <add>, %15, %cst_9 [1] : vector<2x256xf32> to vector<2xf32>
    %17 = vector.shape_cast %16 : vector<2xf32> to vector<2x1xf32>
    %cst_10 = arith.constant 3.906250e-03 : f32
    %18 = vector.broadcast %cst_10 : f32 to vector<2x1xf32>
    %19 = arith.mulf %17, %18 : vector<2x1xf32>
    %c0_11 = arith.constant 0 : index
    %c0_12 = arith.constant 0 : index
    %20 = memref.load %arg2[%c0_11, %c0_12] : memref<4x2xf32, #tpu.memory_space<smem>>
    %21 = vector.broadcast %20 : f32 to vector<2x1xf32>
    %22 = arith.mulf %4, %21 : vector<2x1xf32>
    %c1 = arith.constant 1 : index
    %c0_13 = arith.constant 0 : index
    %23 = memref.load %arg2[%c1, %c0_13] : memref<4x2xf32, #tpu.memory_space<smem>>
    %24 = vector.broadcast %23 : f32 to vector<2x1xf32>
    %25 = arith.mulf %9, %24 : vector<2x1xf32>
    %26 = arith.addf %22, %25 : vector<2x1xf32>
    %c2 = arith.constant 2 : index
    %c0_14 = arith.constant 0 : index
    %27 = memref.load %arg2[%c2, %c0_14] : memref<4x2xf32, #tpu.memory_space<smem>>
    %28 = vector.broadcast %27 : f32 to vector<2x1xf32>
    %29 = arith.mulf %14, %28 : vector<2x1xf32>
    %30 = arith.addf %26, %29 : vector<2x1xf32>
    %c3 = arith.constant 3 : index
    %c0_15 = arith.constant 0 : index
    %31 = memref.load %arg2[%c3, %c0_15] : memref<4x2xf32, #tpu.memory_space<smem>>
    %32 = vector.broadcast %31 : f32 to vector<2x1xf32>
    %33 = arith.mulf %19, %32 : vector<2x1xf32>
    %34 = arith.addf %30, %33 : vector<2x1xf32>
    %c0_16 = arith.constant 0 : index
    %35 = memref.load %arg3[%c0_16] : memref<2xf32, #tpu.memory_space<smem>>
    %36 = vector.broadcast %35 : f32 to vector<2x1xf32>
    %37 = arith.addf %34, %36 : vector<2x1xf32>
    %cst_17 = arith.constant 0.000000e+00 : f32
    %38 = vector.broadcast %cst_17 : f32 to vector<2x1xf32>
    %39 = arith.maximumf %37, %38 : vector<2x1xf32>
    %c0_18 = arith.constant 0 : index
    %c1_19 = arith.constant 1 : index
    %40 = memref.load %arg2[%c0_18, %c1_19] : memref<4x2xf32, #tpu.memory_space<smem>>
    %41 = vector.broadcast %40 : f32 to vector<2x1xf32>
    %42 = arith.mulf %4, %41 : vector<2x1xf32>
    %c1_20 = arith.constant 1 : index
    %c1_21 = arith.constant 1 : index
    %43 = memref.load %arg2[%c1_20, %c1_21] : memref<4x2xf32, #tpu.memory_space<smem>>
    %44 = vector.broadcast %43 : f32 to vector<2x1xf32>
    %45 = arith.mulf %9, %44 : vector<2x1xf32>
    %46 = arith.addf %42, %45 : vector<2x1xf32>
    %c2_22 = arith.constant 2 : index
    %c1_23 = arith.constant 1 : index
    %47 = memref.load %arg2[%c2_22, %c1_23] : memref<4x2xf32, #tpu.memory_space<smem>>
    %48 = vector.broadcast %47 : f32 to vector<2x1xf32>
    %49 = arith.mulf %14, %48 : vector<2x1xf32>
    %50 = arith.addf %46, %49 : vector<2x1xf32>
    %c3_24 = arith.constant 3 : index
    %c1_25 = arith.constant 1 : index
    %51 = memref.load %arg2[%c3_24, %c1_25] : memref<4x2xf32, #tpu.memory_space<smem>>
    %52 = vector.broadcast %51 : f32 to vector<2x1xf32>
    %53 = arith.mulf %19, %52 : vector<2x1xf32>
    %54 = arith.addf %50, %53 : vector<2x1xf32>
    %c1_26 = arith.constant 1 : index
    %55 = memref.load %arg3[%c1_26] : memref<2xf32, #tpu.memory_space<smem>>
    %56 = vector.broadcast %55 : f32 to vector<2x1xf32>
    %57 = arith.addf %54, %56 : vector<2x1xf32>
    %cst_27 = arith.constant 0.000000e+00 : f32
    %58 = vector.broadcast %cst_27 : f32 to vector<2x1xf32>
    %59 = arith.maximumf %57, %58 : vector<2x1xf32>
    %c0_28 = arith.constant 0 : index
    %c0_29 = arith.constant 0 : index
    %60 = memref.load %arg4[%c0_28, %c0_29] : memref<2x4xf32, #tpu.memory_space<smem>>
    %61 = vector.broadcast %60 : f32 to vector<2x1xf32>
    %62 = arith.mulf %39, %61 : vector<2x1xf32>
    %c1_30 = arith.constant 1 : index
    %c0_31 = arith.constant 0 : index
    %63 = memref.load %arg4[%c1_30, %c0_31] : memref<2x4xf32, #tpu.memory_space<smem>>
    %64 = vector.broadcast %63 : f32 to vector<2x1xf32>
    %65 = arith.mulf %59, %64 : vector<2x1xf32>
    %66 = arith.addf %62, %65 : vector<2x1xf32>
    %c0_32 = arith.constant 0 : index
    %67 = memref.load %arg5[%c0_32] : memref<4xf32, #tpu.memory_space<smem>>
    %68 = vector.broadcast %67 : f32 to vector<2x1xf32>
    %69 = arith.addf %66, %68 : vector<2x1xf32>
    %70 = arith.negf %69 : vector<2x1xf32>
    %71 = math.exp %70 : vector<2x1xf32>
    %cst_33 = arith.constant 1.000000e+00 : f32
    %72 = vector.broadcast %cst_33 : f32 to vector<2x1xf32>
    %73 = arith.addf %72, %71 : vector<2x1xf32>
    %74 = arith.divf %72, %73 : vector<2x1xf32>
    %cst_34 = arith.constant 1.000000e+00 : f32
    %75 = vector.broadcast %cst_34 : f32 to vector<2x1xf32>
    %76 = arith.addf %74, %75 : vector<2x1xf32>
    %c0_35 = arith.constant 0 : index
    %c0_36 = arith.constant 0 : index
    %77 = vector.load %arg1[%c0_35, %c0_36] : memref<2x1024xf32, #tpu.memory_space<vmem>>, vector<2x256xf32>
    %78 = vector.broadcast %76 : vector<2x1xf32> to vector<2x256xf32>
    %79 = arith.mulf %77, %78 : vector<2x256xf32>
    %c0_37 = arith.constant 0 : index
    %c0_38 = arith.constant 0 : index
    %80 = vector.load %arg6[%c0_37, %c0_38] : memref<2x1024xf32, #tpu.memory_space<vmem>>, vector<2x256xf32>
    tpu.vector_store %arg6[%c0_37, %c0_38], %79 {strides = array<i32>} : memref<2x1024xf32, #tpu.memory_space<vmem>>, vector<2x256xf32>,
    %c0_39 = arith.constant 0 : index
    %c1_40 = arith.constant 1 : index
    %81 = memref.load %arg4[%c0_39, %c1_40] : memref<2x4xf32, #tpu.memory_space<smem>>
    %82 = vector.broadcast %81 : f32 to vector<2x1xf32>
    %83 = arith.mulf %39, %82 : vector<2x1xf32>
    %c1_41 = arith.constant 1 : index
    %c1_42 = arith.constant 1 : index
    %84 = memref.load %arg4[%c1_41, %c1_42] : memref<2x4xf32, #tpu.memory_space<smem>>
    %85 = vector.broadcast %84 : f32 to vector<2x1xf32>
    %86 = arith.mulf %59, %85 : vector<2x1xf32>
    %87 = arith.addf %83, %86 : vector<2x1xf32>
    %c1_43 = arith.constant 1 : index
    %88 = memref.load %arg5[%c1_43] : memref<4xf32, #tpu.memory_space<smem>>
    %89 = vector.broadcast %88 : f32 to vector<2x1xf32>
    %90 = arith.addf %87, %89 : vector<2x1xf32>
    %91 = arith.negf %90 : vector<2x1xf32>
    %92 = math.exp %91 : vector<2x1xf32>
    %cst_44 = arith.constant 1.000000e+00 : f32
    %93 = vector.broadcast %cst_44 : f32 to vector<2x1xf32>
    %94 = arith.addf %93, %92 : vector<2x1xf32>
    %95 = arith.divf %93, %94 : vector<2x1xf32>
    %cst_45 = arith.constant 1.000000e+00 : f32
    %96 = vector.broadcast %cst_45 : f32 to vector<2x1xf32>
    %97 = arith.addf %95, %96 : vector<2x1xf32>
    %c0_46 = arith.constant 0 : index
    %c256_47 = arith.constant 256 : index
    %98 = vector.load %arg1[%c0_46, %c256_47] : memref<2x1024xf32, #tpu.memory_space<vmem>>, vector<2x256xf32>
    %99 = vector.broadcast %97 : vector<2x1xf32> to vector<2x256xf32>
    %100 = arith.mulf %98, %99 : vector<2x256xf32>
    %c0_48 = arith.constant 0 : index
    %c256_49 = arith.constant 256 : index
    %101 = vector.load %arg6[%c0_48, %c256_49] : memref<2x1024xf32, #tpu.memory_space<vmem>>, vector<2x256xf32>
    tpu.vector_store %arg6[%c0_48, %c256_49], %100 {strides = array<i32>} : memref<2x1024xf32, #tpu.memory_space<vmem>>, vector<2x256xf32>,
    %c0_50 = arith.constant 0 : index
    %c2_51 = arith.constant 2 : index
    %102 = memref.load %arg4[%c0_50, %c2_51] : memref<2x4xf32, #tpu.memory_space<smem>>
    %103 = vector.broadcast %102 : f32 to vector<2x1xf32>
    %104 = arith.mulf %39, %103 : vector<2x1xf32>
    %c1_52 = arith.constant 1 : index
    %c2_53 = arith.constant 2 : index
    %105 = memref.load %arg4[%c1_52, %c2_53] : memref<2x4xf32, #tpu.memory_space<smem>>
    %106 = vector.broadcast %105 : f32 to vector<2x1xf32>
    %107 = arith.mulf %59, %106 : vector<2x1xf32>
    %108 = arith.addf %104, %107 : vector<2x1xf32>
    %c2_54 = arith.constant 2 : index
    %109 = memref.load %arg5[%c2_54] : memref<4xf32, #tpu.memory_space<smem>>
    %110 = vector.broadcast %109 : f32 to vector<2x1xf32>
    %111 = arith.addf %108, %110 : vector<2x1xf32>
    %112 = arith.negf %111 : vector<2x1xf32>
    %113 = math.exp %112 : vector<2x1xf32>
    %cst_55 = arith.constant 1.000000e+00 : f32
    %114 = vector.broadcast %cst_55 : f32 to vector<2x1xf32>
    %115 = arith.addf %114, %113 : vector<2x1xf32>
    %116 = arith.divf %114, %115 : vector<2x1xf32>
    %cst_56 = arith.constant 1.000000e+00 : f32
    %117 = vector.broadcast %cst_56 : f32 to vector<2x1xf32>
    %118 = arith.addf %116, %117 : vector<2x1xf32>
    %c0_57 = arith.constant 0 : index
    %c512_58 = arith.constant 512 : index
    %119 = vector.load %arg1[%c0_57, %c512_58] : memref<2x1024xf32, #tpu.memory_space<vmem>>, vector<2x256xf32>
    %120 = vector.broadcast %118 : vector<2x1xf32> to vector<2x256xf32>
    %121 = arith.mulf %119, %120 : vector<2x256xf32>
    %c0_59 = arith.constant 0 : index
    %c512_60 = arith.constant 512 : index
    %122 = vector.load %arg6[%c0_59, %c512_60] : memref<2x1024xf32, #tpu.memory_space<vmem>>, vector<2x256xf32>
    tpu.vector_store %arg6[%c0_59, %c512_60], %121 {strides = array<i32>} : memref<2x1024xf32, #tpu.memory_space<vmem>>, vector<2x256xf32>,
    %c0_61 = arith.constant 0 : index
    %c3_62 = arith.constant 3 : index
    %123 = memref.load %arg4[%c0_61, %c3_62] : memref<2x4xf32, #tpu.memory_space<smem>>
    %124 = vector.broadcast %123 : f32 to vector<2x1xf32>
    %125 = arith.mulf %39, %124 : vector<2x1xf32>
    %c1_63 = arith.constant 1 : index
    %c3_64 = arith.constant 3 : index
    %126 = memref.load %arg4[%c1_63, %c3_64] : memref<2x4xf32, #tpu.memory_space<smem>>
    %127 = vector.broadcast %126 : f32 to vector<2x1xf32>
    %128 = arith.mulf %59, %127 : vector<2x1xf32>
    %129 = arith.addf %125, %128 : vector<2x1xf32>
    %c3_65 = arith.constant 3 : index
    %130 = memref.load %arg5[%c3_65] : memref<4xf32, #tpu.memory_space<smem>>
    %131 = vector.broadcast %130 : f32 to vector<2x1xf32>
    %132 = arith.addf %129, %131 : vector<2x1xf32>
    %133 = arith.negf %132 : vector<2x1xf32>
    %134 = math.exp %133 : vector<2x1xf32>
    %cst_66 = arith.constant 1.000000e+00 : f32
    %135 = vector.broadcast %cst_66 : f32 to vector<2x1xf32>
    %136 = arith.addf %135, %134 : vector<2x1xf32>
    %137 = arith.divf %135, %136 : vector<2x1xf32>
    %cst_67 = arith.constant 1.000000e+00 : f32
    %138 = vector.broadcast %cst_67 : f32 to vector<2x1xf32>
    %139 = arith.addf %137, %138 : vector<2x1xf32>
    %c0_68 = arith.constant 0 : index
    %c768_69 = arith.constant 768 : index
    %140 = vector.load %arg1[%c0_68, %c768_69] : memref<2x1024xf32, #tpu.memory_space<vmem>>, vector<2x256xf32>
    %141 = vector.broadcast %139 : vector<2x1xf32> to vector<2x256xf32>
    %142 = arith.mulf %140, %141 : vector<2x256xf32>
    %c0_70 = arith.constant 0 : index
    %c768_71 = arith.constant 768 : index
    %143 = vector.load %arg6[%c0_70, %c768_71] : memref<2x1024xf32, #tpu.memory_space<vmem>>, vector<2x256xf32>
    tpu.vector_store %arg6[%c0_70, %c768_71], %142 {strides = array<i32>} : memref<2x1024xf32, #tpu.memory_space<vmem>>, vector<2x256xf32>,
    return
  }
  func.func @transform_0(%arg0: i32) -> (i32, i32) {
    %c0_i32 = arith.constant 0 : i32
    %c0_i32_0 = arith.constant 0 : i32
    return %arg0, %c0_i32 : i32, i32
  }
  func.func @transform_1(%arg0: i32) -> (i32, i32) {
    %c0_i32 = arith.constant 0 : i32
    %c0_i32_0 = arith.constant 0 : i32
    %c0_i32_1 = arith.constant 0 : i32
    return %c0_i32, %c0_i32_0 : i32, i32
  }
  func.func @transform_2(%arg0: i32) -> i32 {
    %c0_i32 = arith.constant 0 : i32
    %c0_i32_0 = arith.constant 0 : i32
    return %c0_i32 : i32
  }
  func.func @transform_3(%arg0: i32) -> (i32, i32) {
    %c0_i32 = arith.constant 0 : i32
    %c0_i32_0 = arith.constant 0 : i32
    %c0_i32_1 = arith.constant 0 : i32
    return %c0_i32, %c0_i32_0 : i32, i32
  }
  func.func @transform_4(%arg0: i32) -> i32 {
    %c0_i32 = arith.constant 0 : i32
    %c0_i32_0 = arith.constant 0 : i32
    return %c0_i32 : i32
  }
  func.func @transform_5(%arg0: i32) -> (i32, i32) {
    %c0_i32 = arith.constant 0 : i32
    %c0_i32_0 = arith.constant 0 : i32
    return %arg0, %c0_i32 : i32, i32
  }
}

</mosaic_0001>

<llo_original>
// kernel: tpu_custom_call.1
$region0: #{tpu_custom_call.1}
  #allocation0 [shape = 'u32[]', space=smem, size = 0x4, offset = 0x4, fixed_abs, tag = 'smem constant byte address 0x4 - core index']
  #allocation1 [shape = 'u32[72,128]{1,0:T(1,128)}', space=vmem, size = 0x9000, scoped, tag = 'internal scratch']
  %s0 = inlined_call_operand.hbm [shape: f32[2,1024], index: 0, kind: input, shape index: {}]
  %s1 = inlined_call_operand.vmem [shape: f32[4,2], index: 1, kind: input, shape index: {}]
  %s2 = inlined_call_operand.vmem [shape: f32[2], index: 2, kind: input, shape index: {}]
  %s3 = inlined_call_operand.vmem [shape: f32[2,4], index: 3, kind: input, shape index: {}]
  %s4 = inlined_call_operand.vmem [shape: f32[4], index: 4, kind: input, shape index: {}]
  %s5 = inlined_call_operand.hbm [shape: f32[2,1024], index: 5, kind: output, shape index: {}]
  %s6 = sld [smem:[#allocation0]]
  $region50: #{tpu_custom_call.1} parent=0
    _
  %s8 = ssub.s32 1, %s6
  %s9 = scalar_select 0, %s8, %s6
  $region1: #{tpu_custom_call.1} parent=0
    #allocation2 [shape = 'u8[8192]{0}', space=vmem, size = 0x2000, scoped, tag = 'input window, operand 0, single buffered']
    #allocation3 [shape = 's32[1]{0}', space=sflag, size = 0x4, scoped, tag = 'scoped memory for tpu_custom_call.1']
    #allocation4 [shape = 's32[1]{0}', space=sflag, size = 0x4, scoped, tag = 'scoped memory for tpu_custom_call.1']
    #allocation5 [shape = 's32[1]{0}', space=sflag, size = 0x4, scoped, tag = 'scoped memory for tpu_custom_call.1']
    #allocation6 [shape = 'u8[2048]{0}', space=smem, size = 0x800, scoped, tag = 'input window, operand 1, single buffered']
    #allocation7 [shape = 'u8[512]{0}', space=smem, size = 0x200, scoped, tag = 'input window, operand 2, single buffered']
    #allocation8 [shape = 's32[1]{0}', space=sflag, size = 0x4, scoped, tag = 'scoped memory for tpu_custom_call.1']
    #allocation9 [shape = 'u8[1024]{0}', space=smem, size = 0x400, scoped, tag = 'input window, operand 3, single buffered']
    #allocation10 [shape = 'u8[512]{0}', space=smem, size = 0x200, scoped, tag = 'input window, operand 4, single buffered']
    #allocation11 [shape = 's32[1]{0}', space=sflag, size = 0x4, scoped, tag = 'scoped memory for tpu_custom_call.1']
    #allocation12 [shape = 'u8[8192]{0}', space=vmem, size = 0x2000, scoped, tag = 'output window, operand 0, single buffered']
    %10 = vsyncpa [#allocation3], 0
    %11 = vsyncpa [#allocation5], 0
    %12 = vsyncpa [#allocation8], 0
    %13 = vsyncpa [#allocation11], 0
    %14 = vsyncpa [#allocation4], 0
    // Predicated region
    $region2: #{tpu_custom_call.1} parent=1 // pred_check
      _
    $region3: #{tpu_custom_call.1} parent=1 // pred_check_branch
      %16 = sbr.rel (0) target = $region5
    $region4: #{tpu_custom_call.1} parent=1 // pred_region
      %18 = vsyncadd [#allocation3], 0
      %s20 = sshll.u32 %s0, 4
      %s21 = int_to_ptr.hbm [resolvable:$true] %s20
      %s22 = sshll.u32 [#allocation2], 4
      %s23 = int_to_ptr.vmem [resolvable:$true] %s22
      %25 = dma.hbm_to_vmem [thread:$0]  %s21, 256, %s23, [#allocation3]
    $region5: #{tpu_custom_call.1} parent=1 // pred_fallthru
      _
    // Predicated region
    $region6: #{tpu_custom_call.1} parent=1 // pred_check
      _
    $region7: #{tpu_custom_call.1} parent=1 // pred_check_branch
      %27 = sbr.rel (0) target = $region9
    $region8: #{tpu_custom_call.1} parent=1 // pred_region
      %29 = vsyncadd [#allocation5], 0
      %s31 = sshll.u32 %s1, 4
      %s32 = int_to_ptr.vmem [resolvable:$true] %s31
      %34 = dma.vmem_to_smem %s32, 64, [#allocation6], [#allocation5]
    $region9: #{tpu_custom_call.1} parent=1 // pred_fallthru
      _
    // Predicated region
    $region10: #{tpu_custom_call.1} parent=1 // pred_check
      _
    $region11: #{tpu_custom_call.1} parent=1 // pred_check_branch
      %36 = sbr.rel (0) target = $region13
    $region12: #{tpu_custom_call.1} parent=1 // pred_region
      %38 = vsyncadd [#allocation8], 0
      %s40 = sshll.u32 %s2, 4
      %s41 = int_to_ptr.vmem [resolvable:$true] %s40
      %43 = dma.vmem_to_smem %s41, 16, [#allocation7], [#allocation8]
    $region13: #{tpu_custom_call.1} parent=1 // pred_fallthru
      _
    // Predicated region
    $region14: #{tpu_custom_call.1} parent=1 // pred_check
      _
    $region15: #{tpu_custom_call.1} parent=1 // pred_check_branch
      %45 = sbr.rel (0) target = $region17
    $region16: #{tpu_custom_call.1} parent=1 // pred_region
      %47 = vsyncadd [#allocation8], 0
      %s49 = sshll.u32 %s3, 4
      %s50 = int_to_ptr.vmem [resolvable:$true] %s49
      %52 = dma.vmem_to_smem %s50, 32, [#allocation9], [#allocation8]
    $region17: #{tpu_custom_call.1} parent=1 // pred_fallthru
      _
    // Predicated region
    $region18: #{tpu_custom_call.1} parent=1 // pred_check
      _
    $region19: #{tpu_custom_call.1} parent=1 // pred_check_branch
      %54 = sbr.rel (0) target = $region21
    $region20: #{tpu_custom_call.1} parent=1 // pred_region
      %56 = vsyncadd [#allocation11], 0
      %s58 = sshll.u32 %s4, 4
      %s59 = int_to_ptr.vmem [resolvable:$true] %s58
      %61 = dma.vmem_to_smem %s59, 16, [#allocation10], [#allocation11]
    $region21: #{tpu_custom_call.1} parent=1 // pred_fallthru
      _
    // Predicated region
    $region22: #{tpu_custom_call.1} parent=1 // pred_check
      _
    $region23: #{tpu_custom_call.1} parent=1 // pred_check_branch
      %63 = sbr.rel (0) target = $region25
    $region24: #{tpu_custom_call.1} parent=1 // pred_region
      %65 = dma.done [#allocation3], 256
    $region25: #{tpu_custom_call.1} parent=1 // pred_fallthru
      _
    // Predicated region
    $region26: #{tpu_custom_call.1} parent=1 // pred_check
      _
    $region27: #{tpu_custom_call.1} parent=1 // pred_check_branch
      %67 = sbr.rel (0) target = $region29
    $region28: #{tpu_custom_call.1} parent=1 // pred_region
      %69 = dma.done [#allocation5], 64
    $region29: #{tpu_custom_call.1} parent=1 // pred_fallthru
      _
    // Predicated region
    $region30: #{tpu_custom_call.1} parent=1 // pred_check
      _
    $region31: #{tpu_custom_call.1} parent=1 // pred_check_branch
      %71 = sbr.rel (0) target = $region33
    $region32: #{tpu_custom_call.1} parent=1 // pred_region
      %73 = dma.done [#allocation8], 16
    $region33: #{tpu_custom_call.1} parent=1 // pred_fallthru
      _
    // Predicated region
    $region34: #{tpu_custom_call.1} parent=1 // pred_check
      _
    $region35: #{tpu_custom_call.1} parent=1 // pred_check_branch
      %75 = sbr.rel (0) target = $region37
    $region36: #{tpu_custom_call.1} parent=1 // pred_region
      %77 = dma.done [#allocation8], 32
    $region37: #{tpu_custom_call.1} parent=1 // pred_fallthru
      _
    // Predicated region
    $region38: #{tpu_custom_call.1} parent=1 // pred_check
      _
    $region39: #{tpu_custom_call.1} parent=1 // pred_check_branch
      %79 = sbr.rel (0) target = $region41
    $region40: #{tpu_custom_call.1} parent=1 // pred_region
      %81 = dma.done [#allocation11], 16
    $region41: #{tpu_custom_call.1} parent=1 // pred_fallthru
      _
    %82 = sfence
    %v83 = vld [vmem:[#allocation2] sm:$0xf]
    %85 = vst [vmem:[#allocation1] ss:$4 sm:$0xff] %v83
    %v86 = vld.sshfl [vmem:[#allocation1] sm:$0xff pattern:$0x73625140]
    %v87 = vld.sshfl [vmem:[#allocation1 + $0x8] sm:$0xff pattern:$0x73625140]
    %vm90 = vcmask 1041408
    %v91 = vsel %vm90, %v86, 0.0
    %v92 = vsel %vm90, %v87, 0.0
    %v93 = vadd.f32 %v91, %v92
    %94 = vadd.xlane.f32.xlu0 %v93
    %v95 = vpop.xlane.xlu0 %94
    %v96 = vmul.f32 %v95, 0.00390625
    %v97 = vld [vmem:[#allocation2 + $0x4] sm:$0xf]
    %99 = vst [vmem:[#allocation1] ss:$4 sm:$0xff] %v97
    %v100 = vld.sshfl [vmem:[#allocation1] sm:$0xff pattern:$0x73625140]
    %v101 = vld.sshfl [vmem:[#allocation1 + $0x8] sm:$0xff pattern:$0x73625140]
    %v104 = vsel %vm90, %v100, 0.0
    %v105 = vsel %vm90, %v101, 0.0
    %v106 = vadd.f32 %v104, %v105
    %107 = vadd.xlane.f32.xlu0 %v106
    %v108 = vpop.xlane.xlu0 %107
    %v109 = vmul.f32 %v108, 0.00390625
    %v110 = vld [vmem:[#allocation2 + $0x8] sm:$0xf]
    %112 = vst [vmem:[#allocation1] ss:$4 sm:$0xff] %v110
    %v113 = vld.sshfl [vmem:[#allocation1] sm:$0xff pattern:$0x73625140]
    %v114 = vld.sshfl [vmem:[#allocation1 + $0x8] sm:$0xff pattern:$0x73625140]
    %v117 = vsel %vm90, %v113, 0.0
    %v118 = vsel %vm90, %v114, 0.0
    %v119 = vadd.f32 %v117, %v118
    %120 = vadd.xlane.f32.xlu0 %v119
    %v121 = vpop.xlane.xlu0 %120
    %v122 = vmul.f32 %v121, 0.00390625
    %v123 = vld [vmem:[#allocation2 + $0xc] sm:$0xf]
    %125 = vst [vmem:[#allocation1] ss:$4 sm:$0xff] %v123
    %v126 = vld.sshfl [vmem:[#allocation1] sm:$0xff pattern:$0x73625140]
    %v127 = vld.sshfl [vmem:[#allocation1 + $0x8] sm:$0xff pattern:$0x73625140]
    %v130 = vsel %vm90, %v126, 0.0
    %v131 = vsel %vm90, %v127, 0.0
    %v132 = vadd.f32 %v130, %v131
    %133 = vadd.xlane.f32.xlu0 %v132
    %v134 = vpop.xlane.xlu0 %133
    %v135 = vmul.f32 %v134, 0.00390625
    %s136 = sld [smem:[#allocation6]]
    %v137 = vstv %s136
    %v138 = vmul.f32 %v96, %v137
    %s139 = sld [smem:[#allocation6 + $0x80]]
    %v140 = vstv %s139
    %v141 = vmul.f32 %v109, %v140
    %v142 = vadd.f32 %v138, %v141
    %s143 = sld [smem:[#allocation6 + $0x100]]
    %v144 = vstv %s143
    %v145 = vmul.f32 %v122, %v144
    %v146 = vadd.f32 %v142, %v145
    %s147 = sld [smem:[#allocation6 + $0x180]]
    %v148 = vstv %s147
    %v149 = vmul.f32 %v135, %v148
    %v150 = vadd.f32 %v146, %v149
    %s151 = sld [smem:[#allocation7]]
    %v152 = vstv %s151
    %v153 = vadd.f32 %v150, %v152
    %v154 = vmax.f32 %v153, 0.0
    %s155 = sld [smem:[#allocation6 + $0x1]]
    %v156 = vstv %s155
    %v157 = vmul.f32 %v96, %v156
    %s158 = sld [smem:[#allocation6 + $0x81]]
    %v159 = vstv %s158
    %v160 = vmul.f32 %v109, %v159
    %v161 = vadd.f32 %v157, %v160
    %s162 = sld [smem:[#allocation6 + $0x101]]
    %v163 = vstv %s162
    %v164 = vmul.f32 %v122, %v163
    %v165 = vadd.f32 %v161, %v164
    %s166 = sld [smem:[#allocation6 + $0x181]]
    %v167 = vstv %s166
    %v168 = vmul.f32 %v135, %v167
    %v169 = vadd.f32 %v165, %v168
    %s170 = sld [smem:[#allocation7 + $0x1]]
    %v171 = vstv %s170
    %v172 = vadd.f32 %v169, %v171
    %v173 = vmax.f32 %v172, 0.0
    %s174 = sld [smem:[#allocation9]]
    %v175 = vstv %s174
    %v176 = vmul.f32 %v154, %v175
    %s177 = sld [smem:[#allocation9 + $0x80]]
    %v178 = vstv %s177
    %v179 = vmul.f32 %v173, %v178
    %v180 = vadd.f32 %v176, %v179
    %s181 = sld [smem:[#allocation10]]
    %v182 = vstv %s181
    %v183 = vadd.f32 %v180, %v182
    %v184 = vxor.u32 %v183, 2147483648
    %v185 = vmul.f32 %v184, 1.442695
    %v186 = vpow.pop %v185
    %v187 = vadd.f32 %v186, 1.0
    %v188 = vrcp.pop %v187
    %v189 = vmul.f32 %v187, %v188
    %v190 = vsub.f32 1.0, %v189
    %v191 = vmul.f32 %v188, %v190
    %v192 = vadd.f32 %v188, %v191
    %vm193 = vweird.f32 %v187
    %vm194 = vweird.f32 %v188
    %vm195 = vmor %vm193, %vm194
    %v196 = vsel %vm195, %v188, %v192
    %v197 = vand.u32 2147483647, %v187
    %vm198 = vcmp.eq.f32.partialorder %v197, 8.507059e+37
    %v199 = vand.u32 %v187, 2147483648
    %v200 = vor.u32 1.1754944e-38, %v199
    %v201 = vsel %vm198, %v200, %v196
    %v202 = vmul.f32 1.0, %v201
    %v203 = vadd.f32 %v202, 1.0
    %v206 = vunpack.c.l.s4 269488144
    %v207 = vunpack.c.0.s8 %v206
    %v208 = vperm.slane %v203, %v207
    %v210 = vmul.f32 %v83, %v208
    %211 = vst [vmem:[#allocation12] sm:$0xf] %v210
    %s212 = sld [smem:[#allocation9 + $0x1]]
    %v213 = vstv %s212
    %v214 = vmul.f32 %v154, %v213
    %s215 = sld [smem:[#allocation9 + $0x81]]
    %v216 = vstv %s215
    %v217 = vmul.f32 %v173, %v216
    %v218 = vadd.f32 %v214, %v217
    %s219 = sld [smem:[#allocation10 + $0x1]]
    %v220 = vstv %s219
    %v221 = vadd.f32 %v218, %v220
    %v222 = vxor.u32 %v221, 2147483648
    %v223 = vmul.f32 %v222, 1.442695
    %v224 = vpow.pop %v223
    %v225 = vadd.f32 %v224, 1.0
    %v226 = vrcp.pop %v225
    %v227 = vmul.f32 %v225, %v226
    %v228 = vsub.f32 1.0, %v227
    %v229 = vmul.f32 %v226, %v228
    %v230 = vadd.f32 %v226, %v229
    %vm231 = vweird.f32 %v225
    %vm232 = vweird.f32 %v226
    %vm233 = vmor %vm231, %vm232
    %v234 = vsel %vm233, %v226, %v230
    %v235 = vand.u32 2147483647, %v225
    %vm236 = vcmp.eq.f32.partialorder %v235, 8.507059e+37
    %v237 = vand.u32 %v225, 2147483648
    %v238 = vor.u32 1.1754944e-38, %v237
    %v239 = vsel %vm236, %v238, %v234
    %v240 = vmul.f32 1.0, %v239
    %v241 = vadd.f32 %v240, 1.0
    %v242 = vld [vmem:[#allocation2 + $0x4] sm:$0xf]
    %v245 = vunpack.c.l.s4 269488144
    %v246 = vunpack.c.0.s8 %v245
    %v247 = vperm.slane %v241, %v246
    %v249 = vmul.f32 %v242, %v247
    %250 = vst [vmem:[#allocation12 + $0x4] sm:$0xf] %v249
    %s251 = sld [smem:[#allocation9 + $0x2]]
    %v252 = vstv %s251
    %v253 = vmul.f32 %v154, %v252
    %s254 = sld [smem:[#allocation9 + $0x82]]
    %v255 = vstv %s254
    %v256 = vmul.f32 %v173, %v255
    %v257 = vadd.f32 %v253, %v256
    %s258 = sld [smem:[#allocation10 + $0x2]]
    %v259 = vstv %s258
    %v260 = vadd.f32 %v257, %v259
    %v261 = vxor.u32 %v260, 2147483648
    %v262 = vmul.f32 %v261, 1.442695
    %v263 = vpow.pop %v262
    %v264 = vadd.f32 %v263, 1.0
    %v265 = vrcp.pop %v264
    %v266 = vmul.f32 %v264, %v265
    %v267 = vsub.f32 1.0, %v266
    %v268 = vmul.f32 %v265, %v267
    %v269 = vadd.f32 %v265, %v268
    %vm270 = vweird.f32 %v264
    %vm271 = vweird.f32 %v265
    %vm272 = vmor %vm270, %vm271
    %v273 = vsel %vm272, %v265, %v269
    %v274 = vand.u32 2147483647, %v264
    %vm275 = vcmp.eq.f32.partialorder %v274, 8.507059e+37
    %v276 = vand.u32 %v264, 2147483648
    %v277 = vor.u32 1.1754944e-38, %v276
    %v278 = vsel %vm275, %v277, %v273
    %v279 = vmul.f32 1.0, %v278
    %v280 = vadd.f32 %v279, 1.0
    %v281 = vld [vmem:[#allocation2 + $0x8] sm:$0xf]
    %v284 = vunpack.c.l.s4 269488144
    %v285 = vunpack.c.0.s8 %v284
    %v286 = vperm.slane %v280, %v285
    %v288 = vmul.f32 %v281, %v286
    %289 = vst [vmem:[#allocation12 + $0x8] sm:$0xf] %v288
    %s290 = sld [smem:[#allocation9 + $0x3]]
    %v291 = vstv %s290
    %v292 = vmul.f32 %v154, %v291
    %s293 = sld [smem:[#allocation9 + $0x83]]
    %v294 = vstv %s293
    %v295 = vmul.f32 %v173, %v294
    %v296 = vadd.f32 %v292, %v295
    %s297 = sld [smem:[#allocation10 + $0x3]]
    %v298 = vstv %s297
    %v299 = vadd.f32 %v296, %v298
    %v300 = vxor.u32 %v299, 2147483648
    %v301 = vmul.f32 %v300, 1.442695
    %v302 = vpow.pop %v301
    %v303 = vadd.f32 %v302, 1.0
    %v304 = vrcp.pop %v303
    %v305 = vmul.f32 %v303, %v304
    %v306 = vsub.f32 1.0, %v305
    %v307 = vmul.f32 %v304, %v306
    %v308 = vadd.f32 %v304, %v307
    %vm309 = vweird.f32 %v303
    %vm310 = vweird.f32 %v304
    %vm311 = vmor %vm309, %vm310
    %v312 = vsel %vm311, %v304, %v308
    %v313 = vand.u32 2147483647, %v303
    %vm314 = vcmp.eq.f32.partialorder %v313, 8.507059e+37
    %v315 = vand.u32 %v303, 2147483648
    %v316 = vor.u32 1.1754944e-38, %v315
    %v317 = vsel %vm314, %v316, %v312
    %v318 = vmul.f32 1.0, %v317
    %v319 = vadd.f32 %v318, 1.0
    %v320 = vld [vmem:[#allocation2 + $0xc] sm:$0xf]
    %v323 = vunpack.c.l.s4 269488144
    %v324 = vunpack.c.0.s8 %v323
    %v325 = vperm.slane %v319, %v324
    %v327 = vmul.f32 %v320, %v325
    %328 = vst [vmem:[#allocation12 + $0xc] sm:$0xf] %v327
    // Predicated region
    $region42: #{tpu_custom_call.1} parent=1 // pred_check
      _
    $region43: #{tpu_custom_call.1} parent=1 // pred_check_branch
      %330 = sbr.rel (0) target = $region45
    $region44: #{tpu_custom_call.1} parent=1 // pred_region
      %332 = vsyncadd [#allocation4], 0
      %s334 = sshll.u32 [#allocation12], 4
      %s335 = int_to_ptr.vmem [resolvable:$true] %s334
      %s336 = sshll.u32 %s5, 4
      %s337 = int_to_ptr.hbm [resolvable:$true] %s336
      %339 = dma.vmem_to_hbm [thread:$0]  %s335, 256, %s337, [#allocation4]
    $region45: #{tpu_custom_call.1} parent=1 // pred_fallthru
      _
    // Predicated region
    $region46: #{tpu_custom_call.1} parent=1 // pred_check
      _
    $region47: #{tpu_custom_call.1} parent=1 // pred_check_branch
      %341 = sbr.rel (0) target = $region49
    $region48: #{tpu_custom_call.1} parent=1 // pred_region
      %343 = dma.done [#allocation4], 256
    $region49: #{tpu_custom_call.1} parent=1 // pred_fallthru
      _
    %344 = vsyncpa [#allocation3], 1
    %345 = vsyncpa [#allocation4], 1
    %346 = vsyncpa [#allocation5], 1
    %347 = vsyncpa [#allocation8], 1
    %348 = vsyncpa [#allocation11], 1

</llo_original>
